<compile_context>
chip_gen: v5e
topology: v5e:2x2
jax: 0.10.0
libtpu: 0.0.40
codegen_flags: <defaults>
</compile_context>

<pallas_src>
import functools

import jax
import jax.numpy as jnp
from jax.experimental import pallas as pl
from jax.experimental.pallas import tpu as pltpu

_BATCH_ALIGN = 16  # bf16 packs 2 rows per sublane -> keep batch tiles 16-aligned


def _round_up(v: int, m: int) -> int:
    return ((v + m - 1) // m) * m


def _bf16_tanh_default() -> bool:
    # bf16 EUP exists on v6e/v7x; keep the f32 tanh path on v5e / unknown chips.
    try:
        kind = jax.devices()[0].device_kind.lower()
        return ("v6" in kind) or ("v7" in kind)
    except Exception:
        return False


_BF16_TANH = _bf16_tanh_default()


def _resident_spec(shape):
    """BlockSpec for a grid-invariant operand: loaded once, single VMEM buffer."""
    try:
        return pl.BlockSpec(shape, lambda i: (0, 0),
                            pipeline_mode=pl.Buffered(buffer_count=1))
    except (TypeError, ValueError):
        # Older jax without pipeline_mode / Buffered(1): default double buffer.
        return pl.BlockSpec(shape, lambda i: (0, 0))


def generator_kernel(x_ref, w1_ref, b1_ref, w2_ref, b2_ref, o_ref, *, act_dtype):
    # Linear(z_dim -> 256): bf16 operands, f32 accumulation on the MXU.
    h = jnp.dot(x_ref[...], w1_ref[...],
                preferred_element_type=jnp.float32) + b1_ref[...]
    # LeakyReLU(0.01) on the VPU, in f32.
    h = jnp.where(h > 0, h, 0.01 * h)
    # Linear(256 -> img_pad): truncate activation to bf16 for the MXU input.
    y = jnp.dot(h.astype(jnp.bfloat16), w2_ref[...],
                preferred_element_type=jnp.float32) + b2_ref[...]
    # Tanh on the EUP (bf16 on v6e/v7x, f32 on v5e); lane-dense store.
    o_ref[...] = jnp.tanh(y.astype(act_dtype)).astype(o_ref.dtype)


def _choose_tiling(batch: int, tile_b: int):
    """Pick (n_tiles, tile_rows, padded_batch) bounding padding waste per tile."""
    tile_b = max(_BATCH_ALIGN, _round_up(tile_b, _BATCH_ALIGN))
    b_aligned = _round_up(batch, _BATCH_ALIGN)
    n_tiles = pl.cdiv(b_aligned, tile_b)
    if b_aligned >= 2 * _BATCH_ALIGN:
        # >= 2 (even) tiles when there is enough work: both v7x TCs get a share.
        n_tiles = _round_up(max(n_tiles, 2), 2)
    tb = _round_up(pl.cdiv(batch, n_tiles), _BATCH_ALIGN)
    return n_tiles, tb, n_tiles * tb


def prepare_generator_params(w1, b1, w2, b2):
    """One-time pad + bf16 cast of the weights (hoisted out of the per-call path)."""
    hidden = w1.shape[1]
    img_dim = w2.shape[1]
    img_pad = _round_up(img_dim, 128)
    w1_b = w1.astype(jnp.bfloat16)
    b1_f = jnp.asarray(b1, jnp.float32).reshape(1, hidden)
    w2_b = jnp.pad(w2, ((0, 0), (0, img_pad - img_dim))).astype(jnp.bfloat16)
    b2_f = jnp.pad(jnp.asarray(b2, jnp.float32).reshape(1, img_dim),
                   ((0, 0), (0, img_pad - img_dim)))
    return w1_b, b1_f, w2_b, b2_f


@functools.partial(
    jax.jit, static_argnames=("img_dim", "tile_b", "out_dtype", "bf16_tanh"))
def generator_forward(x, w1, b1, w2, b2, *, img_dim, tile_b=1024,
                      out_dtype=jnp.bfloat16, bf16_tanh=_BF16_TANH):
    B, z_dim = x.shape

    # Trace-time normalization: zero cost if params came from
    # prepare_generator_params(); otherwise pad/cast here as a fallback.
    if b1.ndim == 1:
        b1 = b1.reshape(1, -1)
    if b2.ndim == 1:
        b2 = b2.reshape(1, -1)
    hidden = w1.shape[1]
    img_pad = w2.shape[1]
    if img_pad % 128 != 0:
        pad = _round_up(img_pad, 128) - img_pad
        w2 = jnp.pad(w2, ((0, 0), (0, pad)))
        b2 = jnp.pad(b2, ((0, 0), (0, pad)))
        img_pad += pad
    if w1.dtype != jnp.bfloat16:
        w1 = w1.astype(jnp.bfloat16)
    if w2.dtype != jnp.bfloat16:
        w2 = w2.astype(jnp.bfloat16)
    b1 = b1.astype(jnp.float32)
    b2 = b2.astype(jnp.float32)

    n_tiles, tb, b_pad = _choose_tiling(B, tile_b)

    x_p = x.astype(jnp.bfloat16)
    if b_pad != B:
        x_p = jnp.pad(x_p, ((0, b_pad - B), (0, 0)))

    act_dtype = (jnp.bfloat16
                 if (bf16_tanh and jnp.dtype(out_dtype) == jnp.dtype(jnp.bfloat16))
                 else jnp.float32)

    out_itemsize = jnp.dtype(out_dtype).itemsize
    flops = 2 * b_pad * (z_dim * hidden + hidden * img_pad)
    bytes_accessed = (x_p.size * 2 + w1.size * 2 + w2.size * 2
                      + b1.size * 4 + b2.size * 4
                      + b_pad * img_pad * out_itemsize)

    out = pl.pallas_call(
        functools.partial(generator_kernel, act_dtype=act_dtype),
        out_shape=jax.ShapeDtypeStruct((b_pad, img_pad), out_dtype),
        grid_spec=pl.GridSpec(
            grid=(n_tiles,),
            in_specs=[
                # x: tiled along batch -> next tile prefetched while computing.
                pl.BlockSpec((tb, z_dim), lambda i: (i, 0)),
                # Weights / biases: grid-invariant, single VMEM buffer.
                _resident_spec((z_dim, hidden)),
                _resident_spec((1, hidden)),
                _resident_spec((hidden, img_pad)),
                _resident_spec((1, img_pad)),
            ],
            out_specs=pl.BlockSpec((tb, img_pad), lambda i: (i, 0)),
        ),
        compiler_params=pltpu.CompilerParams(
            # Independent batch tiles: shard across both TCs on v7x megacore.
            dimension_semantics=("parallel",),
        ),
        cost_estimate=pl.CostEstimate(
            flops=flops,
            transcendentals=b_pad * img_pad,
            bytes_accessed=bytes_accessed,
        ),
    )(x_p, w1, b1, w2, b2)

    return out[:B, :img_dim]


def init_generator_params(key, z_dim, img_dim, hidden=256):
    """Init matching PyTorch nn.Linear default U(-1/sqrt(fan_in), 1/sqrt(fan_in))."""
    k1, k2, k3, k4 = jax.random.split(key, 4)
    lim1 = 1.0 / jnp.sqrt(z_dim)
    lim2 = 1.0 / jnp.sqrt(hidden)
    w1 = jax.random.uniform(k1, (z_dim, hidden), jnp.float32, -lim1, lim1)
    b1 = jax.random.uniform(k2, (1, hidden), jnp.float32, -lim1, lim1)
    w2 = jax.random.uniform(k3, (hidden, img_dim), jnp.float32, -lim2, lim2)
    b2 = jax.random.uniform(k4, (1, img_dim), jnp.float32, -lim2, lim2)
    return w1, b1, w2, b2


def reference_forward(x, w1, b1, w2, b2):
    h = x @ w1 + b1
    h = jnp.where(h > 0, h, 0.01 * h)
    return jnp.tanh(h @ w2 + b2)


if __name__ == "__main__":
    key = jax.random.PRNGKey(0)
    # Small but realistic GAN shapes; img_dim=784 exercises the pad-to-896
    # lane-dense output path, batch=40 exercises the batch-pad + 2-tile grid.
    z_dim, img_dim, batch = 32, 784, 40

    kx, kp = jax.random.split(key)
    x = jax.random.normal(kx, (batch, z_dim), jnp.float32)
    w1, b1, w2, b2 = init_generator_params(kp, z_dim, img_dim)

    # One-time weight pad + bf16 cast, hoisted out of the per-call path.
    w1_p, b1_p, w2_p, b2_p = prepare_generator_params(w1, b1, w2, b2)

    out = generator_forward(x, w1_p, b1_p, w2_p, b2_p, img_dim=img_dim)
    out = jax.block_until_ready(out)

    ref = reference_forward(x, w1, b1, w2, b2)
    assert out.shape == (batch, img_dim), out.shape
    # bf16 matmul operands + bf16 tanh/store (f32 accumulate) -> relaxed tol.
    assert jnp.allclose(out.astype(jnp.float32), ref, atol=2e-2, rtol=2e-2), \
        "mismatch vs reference"

    print("KERNEL_OK")
</pallas_src>

<mosaic_0001>
module attributes {stable_mosaic.version = 11 : i64} {
  func.func @generator_kernel(%arg0: i32, %arg1: memref<32x32xbf16, #tpu.memory_space<vmem>>, %arg2: memref<32x256xbf16, #tpu.memory_space<vmem>>, %arg3: memref<1x256xf32, #tpu.memory_space<vmem>>, %arg4: memref<256x896xbf16, #tpu.memory_space<vmem>>, %arg5: memref<1x896xf32, #tpu.memory_space<vmem>>, %arg6: memref<32x896xbf16, #tpu.memory_space<vmem>>) attributes {dimension_semantics = [#tpu.dimension_semantics<parallel>], iteration_bounds = array<i64: 2>, scalar_prefetch = 0 : i64, scratch_operands = 0 : i64, tpu.core_type = #tpu.core_type<tc>, window_params = [{transform_indices = @transform_0, window_bounds = array<i64: 32, 32>}, {pipeline_mode = #tpu.pipeline_mode<synchronous>, transform_indices = @transform_1, window_bounds = array<i64: 32, 256>}, {pipeline_mode = #tpu.pipeline_mode<synchronous>, transform_indices = @transform_2, window_bounds = array<i64: 1, 256>}, {pipeline_mode = #tpu.pipeline_mode<synchronous>, transform_indices = @transform_3, window_bounds = array<i64: 256, 896>}, {pipeline_mode = #tpu.pipeline_mode<synchronous>, transform_indices = @transform_4, window_bounds = array<i64: 1, 896>}, {transform_indices = @transform_5, window_bounds = array<i64: 32, 896>}]} {
    %c0 = arith.constant 0 : index
    %c0_0 = arith.constant 0 : index
    %0 = vector.load %arg1[%c0, %c0_0] : memref<32x32xbf16, #tpu.memory_space<vmem>>, vector<32x32xbf16>
    %c0_1 = arith.constant 0 : index
    %c0_2 = arith.constant 0 : index
    %1 = vector.load %arg2[%c0_1, %c0_2] : memref<32x256xbf16, #tpu.memory_space<vmem>>, vector<32x256xbf16>
    %cst = arith.constant dense<0.000000e+00> : vector<32x256xf32>
    %2 = tpu.matmul %0, %1, %cst {dimension_numbers = #tpu.dot_dimension_numbers<[1], [0], [0], [1], [0, 0, 1, 1], [], []>} : vector<32x32xbf16>, vector<32x256xbf16>, vector<32x256xf32> -> vector<32x256xf32>
    %c0_3 = arith.constant 0 : index
    %c0_4 = arith.constant 0 : index
    %3 = vector.load %arg3[%c0_3, %c0_4] : memref<1x256xf32, #tpu.memory_space<vmem>>, vector<1x256xf32>
    %4 = vector.broadcast %3 : vector<1x256xf32> to vector<32x256xf32>
    %5 = arith.addf %2, %4 : vector<32x256xf32>
    %cst_5 = arith.constant 0.000000e+00 : f32
    %6 = vector.broadcast %cst_5 : f32 to vector<32x256xf32>
    %7 = arith.cmpf ogt, %5, %6 : vector<32x256xf32>
    %cst_6 = arith.constant 0.00999999977 : f32
    %8 = vector.broadcast %cst_6 : f32 to vector<32x256xf32>
    %9 = arith.mulf %8, %5 : vector<32x256xf32>
    %10 = arith.select %7, %5, %9 : vector<32x256xi1>, vector<32x256xf32>
    %11 = arith.truncf %10 : vector<32x256xf32> to vector<32x256xbf16>
    %c0_7 = arith.constant 0 : index
    %c0_8 = arith.constant 0 : index
    %12 = vector.load %arg4[%c0_7, %c0_8] : memref<256x896xbf16, #tpu.memory_space<vmem>>, vector<256x896xbf16>
    %cst_9 = arith.constant dense<0.000000e+00> : vector<32x896xf32>
    %13 = tpu.matmul %11, %12, %cst_9 {dimension_numbers = #tpu.dot_dimension_numbers<[1], [0], [0], [1], [0, 0, 1, 1], [], []>} : vector<32x256xbf16>, vector<256x896xbf16>, vector<32x896xf32> -> vector<32x896xf32>
    %c0_10 = arith.constant 0 : index
    %c0_11 = arith.constant 0 : index
    %14 = vector.load %arg5[%c0_10, %c0_11] : memref<1x896xf32, #tpu.memory_space<vmem>>, vector<1x896xf32>
    %15 = vector.broadcast %14 : vector<1x896xf32> to vector<32x896xf32>
    %16 = arith.addf %13, %15 : vector<32x896xf32>
    %17 = math.tanh %16 : vector<32x896xf32>
    %18 = arith.truncf %17 : vector<32x896xf32> to vector<32x896xbf16>
    %c0_12 = arith.constant 0 : index
    %c0_13 = arith.constant 0 : index
    %19 = vector.load %arg6[%c0_12, %c0_13] : memref<32x896xbf16, #tpu.memory_space<vmem>>, vector<32x896xbf16>
    tpu.vector_store %arg6[%c0_12, %c0_13], %18 {strides = array<i32>} : memref<32x896xbf16, #tpu.memory_space<vmem>>, vector<32x896xbf16>,
    return
  }
  func.func @transform_0(%arg0: i32) -> (i32, i32) {
    %c0_i32 = arith.constant 0 : i32
    %c0_i32_0 = arith.constant 0 : i32
    return %arg0, %c0_i32 : i32, i32
  }
  func.func @transform_1(%arg0: i32) -> (i32, i32) {
    %c0_i32 = arith.constant 0 : i32
    %c0_i32_0 = arith.constant 0 : i32
    %c0_i32_1 = arith.constant 0 : i32
    return %c0_i32, %c0_i32_0 : i32, i32
  }
  func.func @transform_2(%arg0: i32) -> (i32, i32) {
    %c0_i32 = arith.constant 0 : i32
    %c0_i32_0 = arith.constant 0 : i32
    %c0_i32_1 = arith.constant 0 : i32
    return %c0_i32, %c0_i32_0 : i32, i32
  }
  func.func @transform_3(%arg0: i32) -> (i32, i32) {
    %c0_i32 = arith.constant 0 : i32
    %c0_i32_0 = arith.constant 0 : i32
    %c0_i32_1 = arith.constant 0 : i32
    return %c0_i32, %c0_i32_0 : i32, i32
  }
  func.func @transform_4(%arg0: i32) -> (i32, i32) {
    %c0_i32 = arith.constant 0 : i32
    %c0_i32_0 = arith.constant 0 : i32
    %c0_i32_1 = arith.constant 0 : i32
    return %c0_i32, %c0_i32_0 : i32, i32
  }
  func.func @transform_5(%arg0: i32) -> (i32, i32) {
    %c0_i32 = arith.constant 0 : i32
    %c0_i32_0 = arith.constant 0 : i32
    return %arg0, %c0_i32 : i32, i32
  }
}

</mosaic_0001>

<llo_original>
// kernel: generator_forward.1
$region0: #{generator_forward.1}
  #allocation0 [shape = 'u32[]', space=smem, size = 0x4, offset = 0x4, fixed_abs, tag = 'smem constant byte address 0x4 - core index']
  #allocation1 [shape = 'u32[72,128]{1,0:T(1,128)}', space=vmem, size = 0x9000, scoped, tag = 'internal scratch']
  %s0 = inlined_call_operand.vmem [shape: bf16[64,32], index: 0, kind: input, shape index: {}]
  %s1 = inlined_call_operand.vmem [shape: bf16[32,256], index: 1, kind: input, shape index: {}]
  %s2 = inlined_call_operand.vmem [shape: f32[1,256], index: 2, kind: input, shape index: {}]
  %s3 = inlined_call_operand.hbm [shape: bf16[256,896], index: 3, kind: input, shape index: {}]
  %s4 = inlined_call_operand.vmem [shape: f32[1,896], index: 4, kind: input, shape index: {}]
  %s5 = inlined_call_operand.vmem [shape: bf16[64,896], index: 5, kind: output, shape index: {}]
  %s6 = sld [smem:[#allocation0]]
  $region57: #{generator_forward.1} parent=0
    _
  %s8 = ssub.s32 1, %s6
  %s9 = scalar_select 0, %s8, %s6
  $region1: #{generator_forward.1} parent=0
    #allocation2 [shape = 'u8[458752]{0}', space=vmem, size = 0x70000, scoped, tag = 'input window, operand 3, single buffered']
    #allocation3 [shape = 's32[2]{0}', space=sflag, size = 0x8, scoped, tag = 'scoped memory for generator_forward.1']
    %10 = vsyncpa [#allocation3], 0
    loop: start=0, step=1, limit=4
    $region2: #{generator_forward.1} parent=1 // loop_pre_header
      _
    $region3: #{generator_forward.1} parent=1 // loop_header
      %s12 = sphi 0, %s16
      %p13 = scmp.ge.s32.totalorder %s12, 4
      %s22 = sphi 0, %s24
      %s25 = sphi 0, %s22
      %s26 = sphi 0, %s25
      %s42 = sphi 0, %s26
      %s46 = sphi 0, %s46
      %s48 = sphi 0, %s46
      %s49 = sphi 0, %s48
      %s63 = sphi 0, %s49
      %s67 = sphi 0, %s67
      %s69 = sphi 0, %s67
      %s70 = sphi 0, %s69
      %s84 = sphi 0, %s70
      %s88 = sphi 0, %s88
      %s90 = sphi 0, %s88
      %s91 = sphi 0, %s90
      %s105 = sphi 0, %s91
      %s109 = sphi 0, %s109
      %s111 = sphi 0, %s109
      %s112 = sphi 0, %s111
      %s126 = sphi 0, %s112
      %s132 = sphi 0, %s134
      %s135 = sphi 0, %s132
      %s136 = sphi 0, %s135
      %s152 = sphi 0, %s136
    $region4: #{generator_forward.1} parent=1 // loop_header_branch
      %15 = sbr.rel (%p13) target = $region8
    $region5: #{generator_forward.1} parent=1 // loop_body
      %s17 = ssub.s32 %s12, 1
      %s18 = ssub.s32 %s12, 2
      %s19 = sadd.s32 %s12, 1
      %s20 = ssub.s32 %s12, %s19
      %p21 = scmp.eq.s32.totalorder %s20, 0
      %s23 = sadd.s32 %s22, 1
      %s24 = scalar_select %p21, %s22, %s23
      %p27 = pneg %p21
      %p28 = scmp.eq.s32.totalorder %s12, 1
      %p29 = por %p27, %p28
      %p30 = scmp.ne.s32.totalorder %s22, %s25
      %p31 = scmp.eq.s32.totalorder %s12, 0
      %p32 = por %p30, %p31
      %p33 = scmp.ne.s32.totalorder %s22, %s25
      %p34 = scmp.eq.s32.totalorder %s17, 1
      %p35 = por %p33, %p34
      %p36 = scmp.ne.s32.totalorder %s25, %s26
      %p37 = scmp.eq.s32.totalorder %s17, 0
      %p38 = por %p36, %p37
      %p39 = scmp.ne.s32.totalorder %s25, %s26
      %p40 = scmp.eq.s32.totalorder %s18, 1
      %p41 = por %p39, %p40
      %p43 = scmp.ne.s32.totalorder %s26, %s42
      %p44 = scmp.eq.s32.totalorder %s18, 0
      %p45 = por %p43, %p44
      %s47 = sadd.s32 %s46, 1
      %p50 = scmp.eq.s32.totalorder %s12, 1
      %p51 = scmp.ne.s32.totalorder %s46, %s48
      %p52 = scmp.eq.s32.totalorder %s12, 0
      %p53 = por %p51, %p52
      %p54 = scmp.ne.s32.totalorder %s46, %s48
      %p55 = scmp.eq.s32.totalorder %s17, 1
      %p56 = por %p54, %p55
      %p57 = scmp.ne.s32.totalorder %s48, %s49
      %p58 = scmp.eq.s32.totalorder %s17, 0
      %p59 = por %p57, %p58
      %p60 = scmp.ne.s32.totalorder %s48, %s49
      %p61 = scmp.eq.s32.totalorder %s18, 1
      %p62 = por %p60, %p61
      %p64 = scmp.ne.s32.totalorder %s49, %s63
      %p65 = scmp.eq.s32.totalorder %s18, 0
      %p66 = por %p64, %p65
      %s68 = sadd.s32 %s67, 1
      %p71 = scmp.eq.s32.totalorder %s12, 1
      %p72 = scmp.ne.s32.totalorder %s67, %s69
      %p73 = scmp.eq.s32.totalorder %s12, 0
      %p74 = por %p72, %p73
      %p75 = scmp.ne.s32.totalorder %s67, %s69
      %p76 = scmp.eq.s32.totalorder %s17, 1
      %p77 = por %p75, %p76
      %p78 = scmp.ne.s32.totalorder %s69, %s70
      %p79 = scmp.eq.s32.totalorder %s17, 0
      %p80 = por %p78, %p79
      %p81 = scmp.ne.s32.totalorder %s69, %s70
      %p82 = scmp.eq.s32.totalorder %s18, 1
      %p83 = por %p81, %p82
      %p85 = scmp.ne.s32.totalorder %s70, %s84
      %p86 = scmp.eq.s32.totalorder %s18, 0
      %p87 = por %p85, %p86
      %s89 = sadd.s32 %s88, 1
      %p92 = scmp.eq.s32.totalorder %s12, 1
      %p93 = scmp.ne.s32.totalorder %s88, %s90
      %p94 = scmp.eq.s32.totalorder %s12, 0
      %p95 = por %p93, %p94
      %p96 = scmp.ne.s32.totalorder %s88, %s90
      %p97 = scmp.eq.s32.totalorder %s17, 1
      %p98 = por %p96, %p97
      %p99 = scmp.ne.s32.totalorder %s90, %s91
      %p100 = scmp.eq.s32.totalorder %s17, 0
      %p101 = por %p99, %p100
      %p102 = scmp.ne.s32.totalorder %s90, %s91
      %p103 = scmp.eq.s32.totalorder %s18, 1
      %p104 = por %p102, %p103
      %p106 = scmp.ne.s32.totalorder %s91, %s105
      %p107 = scmp.eq.s32.totalorder %s18, 0
      %p108 = por %p106, %p107
      %s110 = sadd.s32 %s109, 1
      %p113 = scmp.eq.s32.totalorder %s12, 1
      %p114 = scmp.ne.s32.totalorder %s109, %s111
      %p115 = scmp.eq.s32.totalorder %s12, 0
      %p116 = por %p114, %p115
      %p117 = scmp.ne.s32.totalorder %s109, %s111
      %p118 = scmp.eq.s32.totalorder %s17, 1
      %p119 = por %p117, %p118
      %p120 = scmp.ne.s32.totalorder %s111, %s112
      %p121 = scmp.eq.s32.totalorder %s17, 0
      %p122 = por %p120, %p121
      %p123 = scmp.ne.s32.totalorder %s111, %s112
      %p124 = scmp.eq.s32.totalorder %s18, 1
      %p125 = por %p123, %p124
      %p127 = scmp.ne.s32.totalorder %s112, %s126
      %p128 = scmp.eq.s32.totalorder %s18, 0
      %p129 = por %p127, %p128
      %s130 = ssub.s32 %s12, %s19
      %p131 = scmp.eq.s32.totalorder %s130, 0
      %s133 = sadd.s32 %s132, 1
      %s134 = scalar_select %p131, %s132, %s133
      %p137 = pneg %p131
      %p138 = scmp.eq.s32.totalorder %s12, 1
      %p139 = por %p137, %p138
      %p140 = scmp.ne.s32.totalorder %s132, %s135
      %p141 = scmp.eq.s32.totalorder %s12, 0
      %p142 = por %p140, %p141
      %p143 = scmp.ne.s32.totalorder %s132, %s135
      %p144 = scmp.eq.s32.totalorder %s17, 1
      %p145 = por %p143, %p144
      %p146 = scmp.ne.s32.totalorder %s135, %s136
      %p147 = scmp.eq.s32.totalorder %s17, 0
      %p148 = por %p146, %p147
      %p149 = scmp.ne.s32.totalorder %s135, %s136
      %p150 = scmp.eq.s32.totalorder %s18, 1
      %p151 = por %p149, %p150
      %p153 = scmp.ne.s32.totalorder %s136, %s152
      %p154 = scmp.eq.s32.totalorder %s18, 0
      %p155 = por %p153, %p154
      %p156 = scmp.le.s32.totalorder 1, %s12
      %p157 = scmp.lt.s32.totalorder %s12, 3
      %p158 = pnand %p156, %p157
      %p159 = pneg %p158
      // Predicated region
      $region9: #{generator_forward.1} parent=5 // pred_check
        _
      $region10: #{generator_forward.1} parent=5 // pred_check_branch
        %161 = sbr.rel (%p158) target = $region12
      $region11: #{generator_forward.1} parent=5 // pred_region
        %s162 = ssub.s32 %s12, 1
        // Predicated region
        $region13: #{generator_forward.1} parent=11 // pred_check
          %p163 = pneg %p59
        $region14: #{generator_forward.1} parent=11 // pred_check_branch
          %165 = sbr.rel (%p163) target = $region16
        $region15: #{generator_forward.1} parent=11 // pred_region
          _
        $region16: #{generator_forward.1} parent=11 // pred_fallthru
          _
        // Predicated region
        $region17: #{generator_forward.1} parent=11 // pred_check
          %p166 = pneg %p80
        $region18: #{generator_forward.1} parent=11 // pred_check_branch
          %168 = sbr.rel (%p166) target = $region20
        $region19: #{generator_forward.1} parent=11 // pred_region
          _
        $region20: #{generator_forward.1} parent=11 // pred_fallthru
          _
        // Predicated region
        $region21: #{generator_forward.1} parent=11 // pred_check
          %p169 = pneg %p101
        $region22: #{generator_forward.1} parent=11 // pred_check_branch
          %171 = sbr.rel (%p169) target = $region24
        $region23: #{generator_forward.1} parent=11 // pred_region
          %173 = vsyncadd [#allocation3], 0
          %s174 = sshll.u32 %s3, 4
          %s175 = int_to_ptr.hbm [resolvable:$true] %s174
          %s176 = sshll.u32 [#allocation2], 4
          %s177 = int_to_ptr.vmem [resolvable:$true] %s176
          %182 = dma.hbm_to_vmem [thread:$0]  %s175, 14336, %s177, [#allocation3], 448, 448, 28
        $region24: #{generator_forward.1} parent=11 // pred_fallthru
          _
        // Predicated region
        $region25: #{generator_forward.1} parent=11 // pred_check
          %p183 = pneg %p122
        $region26: #{generator_forward.1} parent=11 // pred_check_branch
          %185 = sbr.rel (%p183) target = $region28
        $region27: #{generator_forward.1} parent=11 // pred_region
          _
        $region28: #{generator_forward.1} parent=11 // pred_fallthru
          _
      $region12: #{generator_forward.1} parent=5 // pred_fallthru
        _
      %p186 = scmp.lt.s32.totalorder %s12, 2
      // Predicated region
      $region29: #{generator_forward.1} parent=5 // pred_check
        %p187 = pneg %p186
      $region30: #{generator_forward.1} parent=5 // pred_check_branch
        %189 = sbr.rel (%p187) target = $region32
      $region31: #{generator_forward.1} parent=5 // pred_region
        // Predicated region
        $region33: #{generator_forward.1} parent=31 // pred_check
          %p190 = pneg %p32
        $region34: #{generator_forward.1} parent=31 // pred_check_branch
          %192 = sbr.rel (%p190) target = $region36
        $region35: #{generator_forward.1} parent=31 // pred_region
          %s193 = smul.u32 4, %s12
          %p194 = scmp.lt.s32.totalorder %s193, 7
          %s195 = scalar_select %p194, %s193, 7
          %s196 = smul.addr %s195, 4
          %s197 = scalar_lea.vmem %s0, %s196
          %s198 = smul.u32 4, %s12
        $region36: #{generator_forward.1} parent=31 // pred_fallthru
          _
      $region32: #{generator_forward.1} parent=5 // pred_fallthru
        _
      %p199 = scmp.le.s32.totalorder 1, %s12
      %p200 = scmp.lt.s32.totalorder %s12, 3
      %p201 = pnand %p199, %p200
      %p202 = pneg %p201
      // Predicated region
      $region37: #{generator_forward.1} parent=5 // pred_check
        _
      $region38: #{generator_forward.1} parent=5 // pred_check_branch
        %204 = sbr.rel (%p201) target = $region40
      $region39: #{generator_forward.1} parent=5 // pred_region
        %s205 = ssub.s32 %s12, 1
        // Predicated region
        $region41: #{generator_forward.1} parent=39 // pred_check
          %p206 = pneg %p101
        $region42: #{generator_forward.1} parent=39 // pred_check_branch
          %208 = sbr.rel (%p206) target = $region44
        $region43: #{generator_forward.1} parent=39 // pred_region
          %210 = dma.done [#allocation3], 14336
        $region44: #{generator_forward.1} parent=39 // pred_fallthru
          _
        %s211 = smul.u32 4, %s17
        %p212 = scmp.lt.s32.totalorder %s211, 7
        %s213 = scalar_select %p212, %s211, 7
        %s214 = smul.addr %s213, 4
        %s215 = scalar_lea.vmem %s0, %s214
        %p216 = pneg %p38
        %p217 = pneg %p35
        %p218 = pneg %p59
        %p219 = pneg %p56
        %p220 = pneg %p80
        %p221 = pneg %p77
        %p222 = pneg %p101
        %p223 = pneg %p98
        %p224 = pneg %p122
        %p225 = pneg %p119
        %p226 = pneg %p148
        %p227 = pneg %p145
        %s228 = smul.u32 4, %s17
        %p229 = scmp.lt.s32.totalorder %s228, 7
        %s230 = scalar_select %p229, %s228, 7
        %s231 = smul.addr %s230, 7
        %s232 = smul.addr %s231, 4
        %s233 = scalar_lea.vmem %s5, %s232
        %s234 = smul.u32 4, %s17
        %p235 = scmp.lt.s32.totalorder %s234, 7
        %s236 = scalar_select %p235, %s234, 7
        %s237 = smul.addr %s236, 4
        %s238 = scalar_lea.vmem %s0, %s237
        %s239 = smul.u32 4, %s17
        %s240 = smul.u32 4, %s17
        %p241 = scmp.lt.s32.totalorder %s240, 7
        %s242 = scalar_select %p241, %s240, 7
        %s243 = smul.addr %s242, 7
        %s244 = smul.addr %s243, 4
        %s245 = scalar_lea.vmem %s5, %s244
        %s246 = smul.u32 4, %s17
        %v248 = vld [vmem:[%s238] sm:$0xf]
        %v249 = vld [vmem:[%s238 + $0x4] sm:$0xf]
        %v250 = vld [vmem:[%s238 + $0x8] sm:$0xf]
        %v251 = vld [vmem:[%s238 + $0xc] sm:$0xf]
        %v252 = vld [vmem:[%s1] sm:$0xff]
        %v253 = vld [vmem:[%s1 + $0x8] sm:$0xff]
        %v254 = vld [vmem:[%s1 + $0x10] sm:$0xff]
        %v255 = vld [vmem:[%s1 + $0x18] sm:$0xff]
        %v256 = vld [vmem:[%s2] sm:$0x3]
        %v258 = vperm.slane %v256, 0
        %v259 = vperm.slane %v256, 1
        %v266 = vunpack.c.l.b16 %v248
        %v267 = vunpack.c.l.b16 %v249
        %v268 = vunpack.c.l.b16 %v250
        %v269 = vunpack.c.l.b16 %v251
        %v270 = vpack.c.b16 %v267, %v266
        %v271 = vpack.c.b16 %v269, %v268
        %v276 = vunpack.c.l.b16 %v252
        %v277 = vunpack.c.h.b16 %v252
        %v278 = vunpack.c.l.b16 %v253
        %v279 = vunpack.c.h.b16 %v253
        %v280 = vunpack.c.l.b16 %v254
        %v281 = vunpack.c.h.b16 %v254
        %v282 = vunpack.c.l.b16 %v255
        %v283 = vunpack.c.h.b16 %v255
        %v284 = vpack.c.b16 %v278, %v276
        %v285 = vpack.c.b16 %v279, %v277
        %v286 = vpack.c.b16 %v282, %v280
        %v287 = vpack.c.b16 %v283, %v281
        %vm292 = vcmask 261120
        %v294 = vsel %vm292, %v270, 0
        %v297 = vsel %vm292, %v271, 0
        %299 = vmatpush.bf16.msra.mxu0 0
        %300 = vmatpush.bf16.msra.mxu0 0
        %301 = vmatpush.bf16.msra.mxu0 0
        %302 = vmatpush.bf16.msra.mxu0 0
        %303 = vmatpush.bf16.msra.mxu0 0
        %304 = vmatpush.bf16.msra.mxu0 0
        %305 = vmatpush.bf16.msra.mxu0 %v286
        %306 = vmatpush.bf16.msra.mxu0 %v284
        %307 = vmatmul.bf16.gmra.mxu0 %v294
        %v308 = vpop.f32.mrf.mxu0
        %v309 = vadd.f32 %v258, %v308
        %v310 = vpop.f32.mrf.mxu0
        %v311 = vadd.f32 %v258, %v310
        %312 = vmatmul.bf16.gmra.mxu0 %v297
        %v313 = vpop.f32.mrf.mxu0
        %v314 = vadd.f32 %v258, %v313
        %v315 = vpop.f32.mrf.mxu0
        %v316 = vadd.f32 %v258, %v315
        %317 = vdwg.mxu0
        %318 = vmatpush.bf16.msra.mxu0 0
        %319 = vmatpush.bf16.msra.mxu0 0
        %320 = vmatpush.bf16.msra.mxu0 0
        %321 = vmatpush.bf16.msra.mxu0 0
        %322 = vmatpush.bf16.msra.mxu0 0
        %323 = vmatpush.bf16.msra.mxu0 0
        %324 = vmatpush.bf16.msra.mxu0 %v287
        %325 = vmatpush.bf16.msra.mxu0 %v285
        %326 = vmatmul.bf16.gmra.mxu0 %v294
        %v327 = vpop.f32.mrf.mxu0
        %v328 = vadd.f32 %v259, %v327
        %v329 = vpop.f32.mrf.mxu0
        %v330 = vadd.f32 %v259, %v329
        %331 = vmatmul.bf16.gmra.mxu0 %v297
        %v332 = vpop.f32.mrf.mxu0
        %v333 = vadd.f32 %v259, %v332
        %v334 = vpop.f32.mrf.mxu0
        %v335 = vadd.f32 %v259, %v334
        %336 = vdwg.mxu0
        %vm337 = vcmp.gt.f32.partialorder %v309, 0.0
        %vm338 = vcmp.gt.f32.partialorder %v328, 0.0
        %vm339 = vcmp.gt.f32.partialorder %v311, 0.0
        %vm340 = vcmp.gt.f32.partialorder %v330, 0.0
        %vm341 = vcmp.gt.f32.partialorder %v314, 0.0
        %vm342 = vcmp.gt.f32.partialorder %v333, 0.0
        %vm343 = vcmp.gt.f32.partialorder %v316, 0.0
        %vm344 = vcmp.gt.f32.partialorder %v335, 0.0
        %v345 = vmul.f32 %v309, 0.01
        %v346 = vmul.f32 %v328, 0.01
        %v347 = vmul.f32 %v311, 0.01
        %v348 = vmul.f32 %v330, 0.01
        %v349 = vmul.f32 %v314, 0.01
        %v350 = vmul.f32 %v333, 0.01
        %v351 = vmul.f32 %v316, 0.01
        %v352 = vmul.f32 %v335, 0.01
        %v353 = vsel %vm337, %v309, %v345
        %v354 = vsel %vm338, %v328, %v346
        %v355 = vsel %vm339, %v311, %v347
        %v356 = vsel %vm340, %v330, %v348
        %v357 = vsel %vm341, %v314, %v349
        %v358 = vsel %vm342, %v333, %v350
        %v359 = vsel %vm343, %v316, %v351
        %v360 = vsel %vm344, %v335, %v352
        %v361 = vpack.c.bf16 %v355, %v353
        %v362 = vpack.c.bf16 %v356, %v354
        %v363 = vpack.c.bf16 %v359, %v357
        %v364 = vpack.c.bf16 %v360, %v358
        %v365 = vld [vmem:[#allocation2] sm:$0xff]
        %v366 = vld [vmem:[#allocation2 + $0x8] sm:$0xff]
        %v367 = vld [vmem:[#allocation2 + $0x10] sm:$0xff]
        %v368 = vld [vmem:[#allocation2 + $0x18] sm:$0xf]
        %v369 = vld [vmem:[#allocation2 + $0x1c] sm:$0xff]
        %v370 = vld [vmem:[#allocation2 + $0x24] sm:$0xff]
        %v371 = vld [vmem:[#allocation2 + $0x2c] sm:$0xff]
        %v372 = vld [vmem:[#allocation2 + $0x34] sm:$0xf]
        %v373 = vld [vmem:[#allocation2 + $0x38] sm:$0xff]
        %v374 = vld [vmem:[#allocation2 + $0x40] sm:$0xff]
        %v375 = vld [vmem:[#allocation2 + $0x48] sm:$0xff]
        %v376 = vld [vmem:[#allocation2 + $0x50] sm:$0xf]
        %v377 = vld [vmem:[#allocation2 + $0x54] sm:$0xff]
        %v378 = vld [vmem:[#allocation2 + $0x5c] sm:$0xff]
        %v379 = vld [vmem:[#allocation2 + $0x64] sm:$0xff]
        %v380 = vld [vmem:[#allocation2 + $0x6c] sm:$0xf]
        %v381 = vld [vmem:[#allocation2 + $0x70] sm:$0xff]
        %v382 = vld [vmem:[#allocation2 + $0x78] sm:$0xff]
        %v383 = vld [vmem:[#allocation2 + $0x80] sm:$0xff]
        %v384 = vld [vmem:[#allocation2 + $0x88] sm:$0xf]
        %v385 = vld [vmem:[#allocation2 + $0x8c] sm:$0xff]
        %v386 = vld [vmem:[#allocation2 + $0x94] sm:$0xff]
        %v387 = vld [vmem:[#allocation2 + $0x9c] sm:$0xff]
        %v388 = vld [vmem:[#allocation2 + $0xa4] sm:$0xf]
        %v389 = vld [vmem:[#allocation2 + $0xa8] sm:$0xff]
        %v390 = vld [vmem:[#allocation2 + $0xb0] sm:$0xff]
        %v391 = vld [vmem:[#allocation2 + $0xb8] sm:$0xff]
        %v392 = vld [vmem:[#allocation2 + $0xc0] sm:$0xf]
        %v393 = vld [vmem:[#allocation2 + $0xc4] sm:$0xff]
        %v394 = vld [vmem:[#allocation2 + $0xcc] sm:$0xff]
        %v395 = vld [vmem:[#allocation2 + $0xd4] sm:$0xff]
        %v396 = vld [vmem:[#allocation2 + $0xdc] sm:$0xf]
        %v397 = vld [vmem:[#allocation2 + $0xe0] sm:$0xff]
        %v398 = vld [vmem:[#allocation2 + $0xe8] sm:$0xff]
        %v399 = vld [vmem:[#allocation2 + $0xf0] sm:$0xff]
        %v400 = vld [vmem:[#allocation2 + $0xf8] sm:$0xf]
        %v401 = vld [vmem:[#allocation2 + $0xfc] sm:$0xff]
        %v402 = vld [vmem:[#allocation2 + $0x104] sm:$0xff]
        %v403 = vld [vmem:[#allocation2 + $0x10c] sm:$0xff]
        %v404 = vld [vmem:[#allocation2 + $0x114] sm:$0xf]
        %v405 = vld [vmem:[#allocation2 + $0x118] sm:$0xff]
        %v406 = vld [vmem:[#allocation2 + $0x120] sm:$0xff]
        %v407 = vld [vmem:[#allocation2 + $0x128] sm:$0xff]
        %v408 = vld [vmem:[#allocation2 + $0x130] sm:$0xf]
        %v409 = vld [vmem:[#allocation2 + $0x134] sm:$0xff]
        %v410 = vld [vmem:[#allocation2 + $0x13c] sm:$0xff]
        %v411 = vld [vmem:[#allocation2 + $0x144] sm:$0xff]
        %v412 = vld [vmem:[#allocation2 + $0x14c] sm:$0xf]
        %v413 = vld [vmem:[#allocation2 + $0x150] sm:$0xff]
        %v414 = vld [vmem:[#allocation2 + $0x158] sm:$0xff]
        %v415 = vld [vmem:[#allocation2 + $0x160] sm:$0xff]
        %v416 = vld [vmem:[#allocation2 + $0x168] sm:$0xf]
        %v417 = vld [vmem:[#allocation2 + $0x16c] sm:$0xff]
        %v418 = vld [vmem:[#allocation2 + $0x174] sm:$0xff]
        %v419 = vld [vmem:[#allocation2 + $0x17c] sm:$0xff]
        %v420 = vld [vmem:[#allocation2 + $0x184] sm:$0xf]
        %v421 = vld [vmem:[#allocation2 + $0x188] sm:$0xff]
        %v422 = vld [vmem:[#allocation2 + $0x190] sm:$0xff]
        %v423 = vld [vmem:[#allocation2 + $0x198] sm:$0xff]
        %v424 = vld [vmem:[#allocation2 + $0x1a0] sm:$0xf]
        %v425 = vld [vmem:[#allocation2 + $0x1a4] sm:$0xff]
        %v426 = vld [vmem:[#allocation2 + $0x1ac] sm:$0xff]
        %v427 = vld [vmem:[#allocation2 + $0x1b4] sm:$0xff]
        %v428 = vld [vmem:[#allocation2 + $0x1bc] sm:$0xf]
        %v429 = vld [vmem:[#allocation2 + $0x1c0] sm:$0xff]
        %v430 = vld [vmem:[#allocation2 + $0x1c8] sm:$0xff]
        %v431 = vld [vmem:[#allocation2 + $0x1d0] sm:$0xff]
        %v432 = vld [vmem:[#allocation2 + $0x1d8] sm:$0xf]
        %v433 = vld [vmem:[#allocation2 + $0x1dc] sm:$0xff]
        %v434 = vld [vmem:[#allocation2 + $0x1e4] sm:$0xff]
        %v435 = vld [vmem:[#allocation2 + $0x1ec] sm:$0xff]
        %v436 = vld [vmem:[#allocation2 + $0x1f4] sm:$0xf]
        %v437 = vld [vmem:[#allocation2 + $0x1f8] sm:$0xff]
        %v438 = vld [vmem:[#allocation2 + $0x200] sm:$0xff]
        %v439 = vld [vmem:[#allocation2 + $0x208] sm:$0xff]
        %v440 = vld [vmem:[#allocation2 + $0x210] sm:$0xf]
        %v441 = vld [vmem:[#allocation2 + $0x214] sm:$0xff]
        %v442 = vld [vmem:[#allocation2 + $0x21c] sm:$0xff]
        %v443 = vld [vmem:[#allocation2 + $0x224] sm:$0xff]
        %v444 = vld [vmem:[#allocation2 + $0x22c] sm:$0xf]
        %v445 = vld [vmem:[#allocation2 + $0x230] sm:$0xff]
        %v446 = vld [vmem:[#allocation2 + $0x238] sm:$0xff]
        %v447 = vld [vmem:[#allocation2 + $0x240] sm:$0xff]
        %v448 = vld [vmem:[#allocation2 + $0x248] sm:$0xf]
        %v449 = vld [vmem:[#allocation2 + $0x24c] sm:$0xff]
        %v450 = vld [vmem:[#allocation2 + $0x254] sm:$0xff]
        %v451 = vld [vmem:[#allocation2 + $0x25c] sm:$0xff]
        %v452 = vld [vmem:[#allocation2 + $0x264] sm:$0xf]
        %v453 = vld [vmem:[#allocation2 + $0x268] sm:$0xff]
        %v454 = vld [vmem:[#allocation2 + $0x270] sm:$0xff]
        %v455 = vld [vmem:[#allocation2 + $0x278] sm:$0xff]
        %v456 = vld [vmem:[#allocation2 + $0x280] sm:$0xf]
        %v457 = vld [vmem:[#allocation2 + $0x284] sm:$0xff]
        %v458 = vld [vmem:[#allocation2 + $0x28c] sm:$0xff]
        %v459 = vld [vmem:[#allocation2 + $0x294] sm:$0xff]
        %v460 = vld [vmem:[#allocation2 + $0x29c] sm:$0xf]
        %v461 = vld [vmem:[#allocation2 + $0x2a0] sm:$0xff]
        %v462 = vld [vmem:[#allocation2 + $0x2a8] sm:$0xff]
        %v463 = vld [vmem:[#allocation2 + $0x2b0] sm:$0xff]
        %v464 = vld [vmem:[#allocation2 + $0x2b8] sm:$0xf]
        %v465 = vld [vmem:[#allocation2 + $0x2bc] sm:$0xff]
        %v466 = vld [vmem:[#allocation2 + $0x2c4] sm:$0xff]
        %v467 = vld [vmem:[#allocation2 + $0x2cc] sm:$0xff]
        %v468 = vld [vmem:[#allocation2 + $0x2d4] sm:$0xf]
        %v469 = vld [vmem:[#allocation2 + $0x2d8] sm:$0xff]
        %v470 = vld [vmem:[#allocation2 + $0x2e0] sm:$0xff]
        %v471 = vld [vmem:[#allocation2 + $0x2e8] sm:$0xff]
        %v472 = vld [vmem:[#allocation2 + $0x2f0] sm:$0xf]
        %v473 = vld [vmem:[#allocation2 + $0x2f4] sm:$0xff]
        %v474 = vld [vmem:[#allocation2 + $0x2fc] sm:$0xff]
        %v475 = vld [vmem:[#allocation2 + $0x304] sm:$0xff]
        %v476 = vld [vmem:[#allocation2 + $0x30c] sm:$0xf]
        %v477 = vld [vmem:[#allocation2 + $0x310] sm:$0xff]
        %v478 = vld [vmem:[#allocation2 + $0x318] sm:$0xff]
        %v479 = vld [vmem:[#allocation2 + $0x320] sm:$0xff]
        %v480 = vld [vmem:[#allocation2 + $0x328] sm:$0xf]
        %v481 = vld [vmem:[#allocation2 + $0x32c] sm:$0xff]
        %v482 = vld [vmem:[#allocation2 + $0x334] sm:$0xff]
        %v483 = vld [vmem:[#allocation2 + $0x33c] sm:$0xff]
        %v484 = vld [vmem:[#allocation2 + $0x344] sm:$0xf]
        %v485 = vld [vmem:[#allocation2 + $0x348] sm:$0xff]
        %v486 = vld [vmem:[#allocation2 + $0x350] sm:$0xff]
        %v487 = vld [vmem:[#allocation2 + $0x358] sm:$0xff]
        %v488 = vld [vmem:[#allocation2 + $0x360] sm:$0xf]
        %v489 = vld [vmem:[#allocation2 + $0x364] sm:$0xff]
        %v490 = vld [vmem:[#allocation2 + $0x36c] sm:$0xff]
        %v491 = vld [vmem:[#allocation2 + $0x374] sm:$0xff]
        %v492 = vld [vmem:[#allocation2 + $0x37c] sm:$0xf]
        %v493 = vld [vmem:[%s4] sm:$0xff]
        %v495 = vperm.slane %v493, 0
        %v496 = vperm.slane %v493, 1
        %v497 = vperm.slane %v493, 2
        %v498 = vperm.slane %v493, 3
        %v499 = vperm.slane %v493, 4
        %v500 = vperm.slane %v493, 5
        %v501 = vperm.slane %v493, 6
        %v637 = vunpack.c.l.b16 %v365
        %v638 = vunpack.c.h.b16 %v365
        %v639 = vunpack.c.l.b16 %v366
        %v640 = vunpack.c.h.b16 %v366
        %v641 = vunpack.c.l.b16 %v367
        %v642 = vunpack.c.h.b16 %v367
        %v643 = vunpack.c.l.b16 %v368
        %v644 = vunpack.c.l.b16 %v369
        %v645 = vunpack.c.h.b16 %v369
        %v646 = vunpack.c.l.b16 %v370
        %v647 = vunpack.c.h.b16 %v370
        %v648 = vunpack.c.l.b16 %v371
        %v649 = vunpack.c.h.b16 %v371
        %v650 = vunpack.c.l.b16 %v372
        %v651 = vunpack.c.l.b16 %v373
        %v652 = vunpack.c.h.b16 %v373
        %v653 = vunpack.c.l.b16 %v374
        %v654 = vunpack.c.h.b16 %v374
        %v655 = vunpack.c.l.b16 %v375
        %v656 = vunpack.c.h.b16 %v375
        %v657 = vunpack.c.l.b16 %v376
        %v658 = vunpack.c.l.b16 %v377
        %v659 = vunpack.c.h.b16 %v377
        %v660 = vunpack.c.l.b16 %v378
        %v661 = vunpack.c.h.b16 %v378
        %v662 = vunpack.c.l.b16 %v379
        %v663 = vunpack.c.h.b16 %v379
        %v664 = vunpack.c.l.b16 %v380
        %v665 = vunpack.c.l.b16 %v381
        %v666 = vunpack.c.h.b16 %v381
        %v667 = vunpack.c.l.b16 %v382
        %v668 = vunpack.c.h.b16 %v382
        %v669 = vunpack.c.l.b16 %v383
        %v670 = vunpack.c.h.b16 %v383
        %v671 = vunpack.c.l.b16 %v384
        %v672 = vunpack.c.l.b16 %v385
        %v673 = vunpack.c.h.b16 %v385
        %v674 = vunpack.c.l.b16 %v386
        %v675 = vunpack.c.h.b16 %v386
        %v676 = vunpack.c.l.b16 %v387
        %v677 = vunpack.c.h.b16 %v387
        %v678 = vunpack.c.l.b16 %v388
        %v679 = vunpack.c.l.b16 %v389
        %v680 = vunpack.c.h.b16 %v389
        %v681 = vunpack.c.l.b16 %v390
        %v682 = vunpack.c.h.b16 %v390
        %v683 = vunpack.c.l.b16 %v391
        %v684 = vunpack.c.h.b16 %v391
        %v685 = vunpack.c.l.b16 %v392
        %v686 = vunpack.c.l.b16 %v393
        %v687 = vunpack.c.h.b16 %v393
        %v688 = vunpack.c.l.b16 %v394
        %v689 = vunpack.c.h.b16 %v394
        %v690 = vunpack.c.l.b16 %v395
        %v691 = vunpack.c.h.b16 %v395
        %v692 = vunpack.c.l.b16 %v396
        %v693 = vunpack.c.l.b16 %v397
        %v694 = vunpack.c.h.b16 %v397
        %v695 = vunpack.c.l.b16 %v398
        %v696 = vunpack.c.h.b16 %v398
        %v697 = vunpack.c.l.b16 %v399
        %v698 = vunpack.c.h.b16 %v399
        %v699 = vunpack.c.l.b16 %v400
        %v700 = vunpack.c.l.b16 %v401
        %v701 = vunpack.c.h.b16 %v401
        %v702 = vunpack.c.l.b16 %v402
        %v703 = vunpack.c.h.b16 %v402
        %v704 = vunpack.c.l.b16 %v403
        %v705 = vunpack.c.h.b16 %v403
        %v706 = vunpack.c.l.b16 %v404
        %v707 = vunpack.c.l.b16 %v405
        %v708 = vunpack.c.h.b16 %v405
        %v709 = vunpack.c.l.b16 %v406
        %v710 = vunpack.c.h.b16 %v406
        %v711 = vunpack.c.l.b16 %v407
        %v712 = vunpack.c.h.b16 %v407
        %v713 = vunpack.c.l.b16 %v408
        %v714 = vunpack.c.l.b16 %v409
        %v715 = vunpack.c.h.b16 %v409
        %v716 = vunpack.c.l.b16 %v410
        %v717 = vunpack.c.h.b16 %v410
        %v718 = vunpack.c.l.b16 %v411
        %v719 = vunpack.c.h.b16 %v411
        %v720 = vunpack.c.l.b16 %v412
        %v721 = vunpack.c.l.b16 %v413
        %v722 = vunpack.c.h.b16 %v413
        %v723 = vunpack.c.l.b16 %v414
        %v724 = vunpack.c.h.b16 %v414
        %v725 = vunpack.c.l.b16 %v415
        %v726 = vunpack.c.h.b16 %v415
        %v727 = vunpack.c.l.b16 %v416
        %v728 = vunpack.c.l.b16 %v417
        %v729 = vunpack.c.h.b16 %v417
        %v730 = vunpack.c.l.b16 %v418
        %v731 = vunpack.c.h.b16 %v418
        %v732 = vunpack.c.l.b16 %v419
        %v733 = vunpack.c.h.b16 %v419
        %v734 = vunpack.c.l.b16 %v420
        %v735 = vunpack.c.l.b16 %v421
        %v736 = vunpack.c.h.b16 %v421
        %v737 = vunpack.c.l.b16 %v422
        %v738 = vunpack.c.h.b16 %v422
        %v739 = vunpack.c.l.b16 %v423
        %v740 = vunpack.c.h.b16 %v423
        %v741 = vunpack.c.l.b16 %v424
        %v742 = vunpack.c.l.b16 %v425
        %v743 = vunpack.c.h.b16 %v425
        %v744 = vunpack.c.l.b16 %v426
        %v745 = vunpack.c.h.b16 %v426
        %v746 = vunpack.c.l.b16 %v427
        %v747 = vunpack.c.h.b16 %v427
        %v748 = vunpack.c.l.b16 %v428
        %v749 = vunpack.c.l.b16 %v429
        %v750 = vunpack.c.h.b16 %v429
        %v751 = vunpack.c.l.b16 %v430
        %v752 = vunpack.c.h.b16 %v430
        %v753 = vunpack.c.l.b16 %v431
        %v754 = vunpack.c.h.b16 %v431
        %v755 = vunpack.c.l.b16 %v432
        %v756 = vunpack.c.l.b16 %v433
        %v757 = vunpack.c.h.b16 %v433
        %v758 = vunpack.c.l.b16 %v434
        %v759 = vunpack.c.h.b16 %v434
        %v760 = vunpack.c.l.b16 %v435
        %v761 = vunpack.c.h.b16 %v435
        %v762 = vunpack.c.l.b16 %v436
        %v763 = vunpack.c.l.b16 %v437
        %v764 = vunpack.c.h.b16 %v437
        %v765 = vunpack.c.l.b16 %v438
        %v766 = vunpack.c.h.b16 %v438
        %v767 = vunpack.c.l.b16 %v439
        %v768 = vunpack.c.h.b16 %v439
        %v769 = vunpack.c.l.b16 %v440
        %v770 = vunpack.c.l.b16 %v441
        %v771 = vunpack.c.h.b16 %v441
        %v772 = vunpack.c.l.b16 %v442
        %v773 = vunpack.c.h.b16 %v442
        %v774 = vunpack.c.l.b16 %v443
        %v775 = vunpack.c.h.b16 %v443
        %v776 = vunpack.c.l.b16 %v444
        %v777 = vunpack.c.l.b16 %v445
        %v778 = vunpack.c.h.b16 %v445
        %v779 = vunpack.c.l.b16 %v446
        %v780 = vunpack.c.h.b16 %v446
        %v781 = vunpack.c.l.b16 %v447
        %v782 = vunpack.c.h.b16 %v447
        %v783 = vunpack.c.l.b16 %v448
        %v784 = vunpack.c.l.b16 %v449
        %v785 = vunpack.c.h.b16 %v449
        %v786 = vunpack.c.l.b16 %v450
        %v787 = vunpack.c.h.b16 %v450
        %v788 = vunpack.c.l.b16 %v451
        %v789 = vunpack.c.h.b16 %v451
        %v790 = vunpack.c.l.b16 %v452
        %v791 = vunpack.c.l.b16 %v453
        %v792 = vunpack.c.h.b16 %v453
        %v793 = vunpack.c.l.b16 %v454
        %v794 = vunpack.c.h.b16 %v454
        %v795 = vunpack.c.l.b16 %v455
        %v796 = vunpack.c.h.b16 %v455
        %v797 = vunpack.c.l.b16 %v456
        %v798 = vunpack.c.l.b16 %v457
        %v799 = vunpack.c.h.b16 %v457
        %v800 = vunpack.c.l.b16 %v458
        %v801 = vunpack.c.h.b16 %v458
        %v802 = vunpack.c.l.b16 %v459
        %v803 = vunpack.c.h.b16 %v459
        %v804 = vunpack.c.l.b16 %v460
        %v805 = vunpack.c.l.b16 %v461
        %v806 = vunpack.c.h.b16 %v461
        %v807 = vunpack.c.l.b16 %v462
        %v808 = vunpack.c.h.b16 %v462
        %v809 = vunpack.c.l.b16 %v463
        %v810 = vunpack.c.h.b16 %v463
        %v811 = vunpack.c.l.b16 %v464
        %v812 = vunpack.c.l.b16 %v465
        %v813 = vunpack.c.h.b16 %v465
        %v814 = vunpack.c.l.b16 %v466
        %v815 = vunpack.c.h.b16 %v466
        %v816 = vunpack.c.l.b16 %v467
        %v817 = vunpack.c.h.b16 %v467
        %v818 = vunpack.c.l.b16 %v468
        %v819 = vunpack.c.l.b16 %v469
        %v820 = vunpack.c.h.b16 %v469
        %v821 = vunpack.c.l.b16 %v470
        %v822 = vunpack.c.h.b16 %v470
        %v823 = vunpack.c.l.b16 %v471
        %v824 = vunpack.c.h.b16 %v471
        %v825 = vunpack.c.l.b16 %v472
        %v826 = vunpack.c.l.b16 %v473
        %v827 = vunpack.c.h.b16 %v473
        %v828 = vunpack.c.l.b16 %v474
        %v829 = vunpack.c.h.b16 %v474
        %v830 = vunpack.c.l.b16 %v475
        %v831 = vunpack.c.h.b16 %v475
        %v832 = vunpack.c.l.b16 %v476
        %v833 = vunpack.c.l.b16 %v477
        %v834 = vunpack.c.h.b16 %v477
        %v835 = vunpack.c.l.b16 %v478
        %v836 = vunpack.c.h.b16 %v478
        %v837 = vunpack.c.l.b16 %v479
        %v838 = vunpack.c.h.b16 %v479
        %v839 = vunpack.c.l.b16 %v480
        %v840 = vunpack.c.l.b16 %v481
        %v841 = vunpack.c.h.b16 %v481
        %v842 = vunpack.c.l.b16 %v482
        %v843 = vunpack.c.h.b16 %v482
        %v844 = vunpack.c.l.b16 %v483
        %v845 = vunpack.c.h.b16 %v483
        %v846 = vunpack.c.l.b16 %v484
        %v847 = vunpack.c.l.b16 %v485
        %v848 = vunpack.c.h.b16 %v485
        %v849 = vunpack.c.l.b16 %v486
        %v850 = vunpack.c.h.b16 %v486
        %v851 = vunpack.c.l.b16 %v487
        %v852 = vunpack.c.h.b16 %v487
        %v853 = vunpack.c.l.b16 %v488
        %v854 = vunpack.c.l.b16 %v489
        %v855 = vunpack.c.h.b16 %v489
        %v856 = vunpack.c.l.b16 %v490
        %v857 = vunpack.c.h.b16 %v490
        %v858 = vunpack.c.l.b16 %v491
        %v859 = vunpack.c.h.b16 %v491
        %v860 = vunpack.c.l.b16 %v492
        %v861 = vpack.c.b16 %v644, %v637
        %v862 = vpack.c.b16 %v645, %v638
        %v863 = vpack.c.b16 %v646, %v639
        %v864 = vpack.c.b16 %v647, %v640
        %v865 = vpack.c.b16 %v648, %v641
        %v866 = vpack.c.b16 %v649, %v642
        %v867 = vpack.c.b16 %v650, %v643
        %v868 = vpack.c.b16 %v658, %v651
        %v869 = vpack.c.b16 %v659, %v652
        %v870 = vpack.c.b16 %v660, %v653
        %v871 = vpack.c.b16 %v661, %v654
        %v872 = vpack.c.b16 %v662, %v655
        %v873 = vpack.c.b16 %v663, %v656
        %v874 = vpack.c.b16 %v664, %v657
        %v875 = vpack.c.b16 %v672, %v665
        %v876 = vpack.c.b16 %v673, %v666
        %v877 = vpack.c.b16 %v674, %v667
        %v878 = vpack.c.b16 %v675, %v668
        %v879 = vpack.c.b16 %v676, %v669
        %v880 = vpack.c.b16 %v677, %v670
        %v881 = vpack.c.b16 %v678, %v671
        %v882 = vpack.c.b16 %v686, %v679
        %v883 = vpack.c.b16 %v687, %v680
        %v884 = vpack.c.b16 %v688, %v681
        %v885 = vpack.c.b16 %v689, %v682
        %v886 = vpack.c.b16 %v690, %v683
        %v887 = vpack.c.b16 %v691, %v684
        %v888 = vpack.c.b16 %v692, %v685
        %v889 = vpack.c.b16 %v700, %v693
        %v890 = vpack.c.b16 %v701, %v694
        %v891 = vpack.c.b16 %v702, %v695
        %v892 = vpack.c.b16 %v703, %v696
        %v893 = vpack.c.b16 %v704, %v697
        %v894 = vpack.c.b16 %v705, %v698
        %v895 = vpack.c.b16 %v706, %v699
        %v896 = vpack.c.b16 %v714, %v707
        %v897 = vpack.c.b16 %v715, %v708
        %v898 = vpack.c.b16 %v716, %v709
        %v899 = vpack.c.b16 %v717, %v710
        %v900 = vpack.c.b16 %v718, %v711
        %v901 = vpack.c.b16 %v719, %v712
        %v902 = vpack.c.b16 %v720, %v713
        %v903 = vpack.c.b16 %v728, %v721
        %v904 = vpack.c.b16 %v729, %v722
        %v905 = vpack.c.b16 %v730, %v723
        %v906 = vpack.c.b16 %v731, %v724
        %v907 = vpack.c.b16 %v732, %v725
        %v908 = vpack.c.b16 %v733, %v726
        %v909 = vpack.c.b16 %v734, %v727
        %v910 = vpack.c.b16 %v742, %v735
        %v911 = vpack.c.b16 %v743, %v736
        %v912 = vpack.c.b16 %v744, %v737
        %v913 = vpack.c.b16 %v745, %v738
        %v914 = vpack.c.b16 %v746, %v739
        %v915 = vpack.c.b16 %v747, %v740
        %v916 = vpack.c.b16 %v748, %v741
        %v917 = vpack.c.b16 %v756, %v749
        %v918 = vpack.c.b16 %v757, %v750
        %v919 = vpack.c.b16 %v758, %v751
        %v920 = vpack.c.b16 %v759, %v752
        %v921 = vpack.c.b16 %v760, %v753
        %v922 = vpack.c.b16 %v761, %v754
        %v923 = vpack.c.b16 %v762, %v755
        %v924 = vpack.c.b16 %v770, %v763
        %v925 = vpack.c.b16 %v771, %v764
        %v926 = vpack.c.b16 %v772, %v765
        %v927 = vpack.c.b16 %v773, %v766
        %v928 = vpack.c.b16 %v774, %v767
        %v929 = vpack.c.b16 %v775, %v768
        %v930 = vpack.c.b16 %v776, %v769
        %v931 = vpack.c.b16 %v784, %v777
        %v932 = vpack.c.b16 %v785, %v778
        %v933 = vpack.c.b16 %v786, %v779
        %v934 = vpack.c.b16 %v787, %v780
        %v935 = vpack.c.b16 %v788, %v781
        %v936 = vpack.c.b16 %v789, %v782
        %v937 = vpack.c.b16 %v790, %v783
        %v938 = vpack.c.b16 %v798, %v791
        %v939 = vpack.c.b16 %v799, %v792
        %v940 = vpack.c.b16 %v800, %v793
        %v941 = vpack.c.b16 %v801, %v794
        %v942 = vpack.c.b16 %v802, %v795
        %v943 = vpack.c.b16 %v803, %v796
        %v944 = vpack.c.b16 %v804, %v797
        %v945 = vpack.c.b16 %v812, %v805
        %v946 = vpack.c.b16 %v813, %v806
        %v947 = vpack.c.b16 %v814, %v807
        %v948 = vpack.c.b16 %v815, %v808
        %v949 = vpack.c.b16 %v816, %v809
        %v950 = vpack.c.b16 %v817, %v810
        %v951 = vpack.c.b16 %v818, %v811
        %v952 = vpack.c.b16 %v826, %v819
        %v953 = vpack.c.b16 %v827, %v820
        %v954 = vpack.c.b16 %v828, %v821
        %v955 = vpack.c.b16 %v829, %v822
        %v956 = vpack.c.b16 %v830, %v823
        %v957 = vpack.c.b16 %v831, %v824
        %v958 = vpack.c.b16 %v832, %v825
        %v959 = vpack.c.b16 %v840, %v833
        %v960 = vpack.c.b16 %v841, %v834
        %v961 = vpack.c.b16 %v842, %v835
        %v962 = vpack.c.b16 %v843, %v836
        %v963 = vpack.c.b16 %v844, %v837
        %v964 = vpack.c.b16 %v845, %v838
        %v965 = vpack.c.b16 %v846, %v839
        %v966 = vpack.c.b16 %v854, %v847
        %v967 = vpack.c.b16 %v855, %v848
        %v968 = vpack.c.b16 %v856, %v849
        %v969 = vpack.c.b16 %v857, %v850
        %v970 = vpack.c.b16 %v858, %v851
        %v971 = vpack.c.b16 %v859, %v852
        %v972 = vpack.c.b16 %v860, %v853
        %1085 = vmatpush.bf16.msra.mxu0 %v910
        %1086 = vmatpush.bf16.msra.mxu0 %v903
        %1087 = vmatpush.bf16.msra.mxu0 %v896
        %1088 = vmatpush.bf16.msra.mxu0 %v889
        %1089 = vmatpush.bf16.msra.mxu0 %v882
        %1090 = vmatpush.bf16.msra.mxu0 %v875
        %1091 = vmatpush.bf16.msra.mxu0 %v868
        %1092 = vmatpush.bf16.msra.mxu0 %v861
        %1093 = vmatmul.bf16.gmra.mxu0 %v361
        %v1094 = vpop.f32.mrf.mxu0
        %v1095 = vadd.f32 %v495, %v1094
        %v1096 = vpop.f32.mrf.mxu0
        %v1097 = vadd.f32 %v495, %v1096
        %1098 = vmatmul.bf16.gmra.mxu0 %v363
        %v1099 = vpop.f32.mrf.mxu0
        %v1100 = vadd.f32 %v495, %v1099
        %v1101 = vpop.f32.mrf.mxu0
        %v1102 = vadd.f32 %v495, %v1101
        %1103 = vdwg.mxu0
        %1104 = vmatpush.bf16.msra.mxu0 %v966
        %1105 = vmatpush.bf16.msra.mxu0 %v959
        %1106 = vmatpush.bf16.msra.mxu0 %v952
        %1107 = vmatpush.bf16.msra.mxu0 %v945
        %1108 = vmatpush.bf16.msra.mxu0 %v938
        %1109 = vmatpush.bf16.msra.mxu0 %v931
        %1110 = vmatpush.bf16.msra.mxu0 %v924
        %1111 = vmatpush.bf16.msra.mxu0 %v917
        %1112 = vmatmul.bf16.gmra.mxu0 %v362
        %v1113 = vpop.f32.mrf.mxu0
        %v1114 = vadd.f32 %v1095, %v1113
        %v1115 = vpop.f32.mrf.mxu0
        %v1116 = vadd.f32 %v1097, %v1115
        %1117 = vmatmul.bf16.gmra.mxu0 %v364
        %v1118 = vpop.f32.mrf.mxu0
        %v1119 = vadd.f32 %v1100, %v1118
        %v1120 = vpop.f32.mrf.mxu0
        %v1121 = vadd.f32 %v1102, %v1120
        %1122 = vdwg.mxu0
        %1123 = vmatpush.bf16.msra.mxu0 %v911
        %1124 = vmatpush.bf16.msra.mxu0 %v904
        %1125 = vmatpush.bf16.msra.mxu0 %v897
        %1126 = vmatpush.bf16.msra.mxu0 %v890
        %1127 = vmatpush.bf16.msra.mxu0 %v883
        %1128 = vmatpush.bf16.msra.mxu0 %v876
        %1129 = vmatpush.bf16.msra.mxu0 %v869
        %1130 = vmatpush.bf16.msra.mxu0 %v862
        %1131 = vmatmul.bf16.gmra.mxu0 %v361
        %v1132 = vpop.f32.mrf.mxu0
        %v1133 = vadd.f32 %v496, %v1132
        %v1134 = vpop.f32.mrf.mxu0
        %v1135 = vadd.f32 %v496, %v1134
        %1136 = vmatmul.bf16.gmra.mxu0 %v363
        %v1137 = vpop.f32.mrf.mxu0
        %v1138 = vadd.f32 %v496, %v1137
        %v1139 = vpop.f32.mrf.mxu0
        %v1140 = vadd.f32 %v496, %v1139
        %1141 = vdwg.mxu0
        %1142 = vmatpush.bf16.msra.mxu0 %v967
        %1143 = vmatpush.bf16.msra.mxu0 %v960
        %1144 = vmatpush.bf16.msra.mxu0 %v953
        %1145 = vmatpush.bf16.msra.mxu0 %v946
        %1146 = vmatpush.bf16.msra.mxu0 %v939
        %1147 = vmatpush.bf16.msra.mxu0 %v932
        %1148 = vmatpush.bf16.msra.mxu0 %v925
        %1149 = vmatpush.bf16.msra.mxu0 %v918
        %1150 = vmatmul.bf16.gmra.mxu0 %v362
        %v1151 = vpop.f32.mrf.mxu0
        %v1152 = vadd.f32 %v1133, %v1151
        %v1153 = vpop.f32.mrf.mxu0
        %v1154 = vadd.f32 %v1135, %v1153
        %1155 = vmatmul.bf16.gmra.mxu0 %v364
        %v1156 = vpop.f32.mrf.mxu0
        %v1157 = vadd.f32 %v1138, %v1156
        %v1158 = vpop.f32.mrf.mxu0
        %v1159 = vadd.f32 %v1140, %v1158
        %1160 = vdwg.mxu0
        %1161 = vmatpush.bf16.msra.mxu0 %v912
        %1162 = vmatpush.bf16.msra.mxu0 %v905
        %1163 = vmatpush.bf16.msra.mxu0 %v898
        %1164 = vmatpush.bf16.msra.mxu0 %v891
        %1165 = vmatpush.bf16.msra.mxu0 %v884
        %1166 = vmatpush.bf16.msra.mxu0 %v877
        %1167 = vmatpush.bf16.msra.mxu0 %v870
        %1168 = vmatpush.bf16.msra.mxu0 %v863
        %1169 = vmatmul.bf16.gmra.mxu0 %v361
        %v1170 = vpop.f32.mrf.mxu0
        %v1171 = vadd.f32 %v497, %v1170
        %v1172 = vpop.f32.mrf.mxu0
        %v1173 = vadd.f32 %v497, %v1172
        %1174 = vmatmul.bf16.gmra.mxu0 %v363
        %v1175 = vpop.f32.mrf.mxu0
        %v1176 = vadd.f32 %v497, %v1175
        %v1177 = vpop.f32.mrf.mxu0
        %v1178 = vadd.f32 %v497, %v1177
        %1179 = vdwg.mxu0
        %1180 = vmatpush.bf16.msra.mxu0 %v968
        %1181 = vmatpush.bf16.msra.mxu0 %v961
        %1182 = vmatpush.bf16.msra.mxu0 %v954
        %1183 = vmatpush.bf16.msra.mxu0 %v947
        %1184 = vmatpush.bf16.msra.mxu0 %v940
        %1185 = vmatpush.bf16.msra.mxu0 %v933
        %1186 = vmatpush.bf16.msra.mxu0 %v926
        %1187 = vmatpush.bf16.msra.mxu0 %v919
        %1188 = vmatmul.bf16.gmra.mxu0 %v362
        %v1189 = vpop.f32.mrf.mxu0
        %v1190 = vadd.f32 %v1171, %v1189
        %v1191 = vpop.f32.mrf.mxu0
        %v1192 = vadd.f32 %v1173, %v1191
        %1193 = vmatmul.bf16.gmra.mxu0 %v364
        %v1194 = vpop.f32.mrf.mxu0
        %v1195 = vadd.f32 %v1176, %v1194
        %v1196 = vpop.f32.mrf.mxu0
        %v1197 = vadd.f32 %v1178, %v1196
        %1198 = vdwg.mxu0
        %1199 = vmatpush.bf16.msra.mxu0 %v913
        %1200 = vmatpush.bf16.msra.mxu0 %v906
        %1201 = vmatpush.bf16.msra.mxu0 %v899
        %1202 = vmatpush.bf16.msra.mxu0 %v892
        %1203 = vmatpush.bf16.msra.mxu0 %v885
        %1204 = vmatpush.bf16.msra.mxu0 %v878
        %1205 = vmatpush.bf16.msra.mxu0 %v871
        %1206 = vmatpush.bf16.msra.mxu0 %v864
        %1207 = vmatmul.bf16.gmra.mxu0 %v361
        %v1208 = vpop.f32.mrf.mxu0
        %v1209 = vadd.f32 %v498, %v1208
        %v1210 = vpop.f32.mrf.mxu0
        %v1211 = vadd.f32 %v498, %v1210
        %1212 = vmatmul.bf16.gmra.mxu0 %v363
        %v1213 = vpop.f32.mrf.mxu0
        %v1214 = vadd.f32 %v498, %v1213
        %v1215 = vpop.f32.mrf.mxu0
        %v1216 = vadd.f32 %v498, %v1215
        %1217 = vdwg.mxu0
        %1218 = vmatpush.bf16.msra.mxu0 %v969
        %1219 = vmatpush.bf16.msra.mxu0 %v962
        %1220 = vmatpush.bf16.msra.mxu0 %v955
        %1221 = vmatpush.bf16.msra.mxu0 %v948
        %1222 = vmatpush.bf16.msra.mxu0 %v941
        %1223 = vmatpush.bf16.msra.mxu0 %v934
        %1224 = vmatpush.bf16.msra.mxu0 %v927
        %1225 = vmatpush.bf16.msra.mxu0 %v920
        %1226 = vmatmul.bf16.gmra.mxu0 %v362
        %v1227 = vpop.f32.mrf.mxu0
        %v1228 = vadd.f32 %v1209, %v1227
        %v1229 = vpop.f32.mrf.mxu0
        %v1230 = vadd.f32 %v1211, %v1229
        %1231 = vmatmul.bf16.gmra.mxu0 %v364
        %v1232 = vpop.f32.mrf.mxu0
        %v1233 = vadd.f32 %v1214, %v1232
        %v1234 = vpop.f32.mrf.mxu0
        %v1235 = vadd.f32 %v1216, %v1234
        %1236 = vdwg.mxu0
        %1237 = vmatpush.bf16.msra.mxu0 %v914
        %1238 = vmatpush.bf16.msra.mxu0 %v907
        %1239 = vmatpush.bf16.msra.mxu0 %v900
        %1240 = vmatpush.bf16.msra.mxu0 %v893
        %1241 = vmatpush.bf16.msra.mxu0 %v886
        %1242 = vmatpush.bf16.msra.mxu0 %v879
        %1243 = vmatpush.bf16.msra.mxu0 %v872
        %1244 = vmatpush.bf16.msra.mxu0 %v865
        %1245 = vmatmul.bf16.gmra.mxu0 %v361
        %v1246 = vpop.f32.mrf.mxu0
        %v1247 = vadd.f32 %v499, %v1246
        %v1248 = vpop.f32.mrf.mxu0
        %v1249 = vadd.f32 %v499, %v1248
        %1250 = vmatmul.bf16.gmra.mxu0 %v363
        %v1251 = vpop.f32.mrf.mxu0
        %v1252 = vadd.f32 %v499, %v1251
        %v1253 = vpop.f32.mrf.mxu0
        %v1254 = vadd.f32 %v499, %v1253
        %1255 = vdwg.mxu0
        %1256 = vmatpush.bf16.msra.mxu0 %v970
        %1257 = vmatpush.bf16.msra.mxu0 %v963
        %1258 = vmatpush.bf16.msra.mxu0 %v956
        %1259 = vmatpush.bf16.msra.mxu0 %v949
        %1260 = vmatpush.bf16.msra.mxu0 %v942
        %1261 = vmatpush.bf16.msra.mxu0 %v935
        %1262 = vmatpush.bf16.msra.mxu0 %v928
        %1263 = vmatpush.bf16.msra.mxu0 %v921
        %1264 = vmatmul.bf16.gmra.mxu0 %v362
        %v1265 = vpop.f32.mrf.mxu0
        %v1266 = vadd.f32 %v1247, %v1265
        %v1267 = vpop.f32.mrf.mxu0
        %v1268 = vadd.f32 %v1249, %v1267
        %1269 = vmatmul.bf16.gmra.mxu0 %v364
        %v1270 = vpop.f32.mrf.mxu0
        %v1271 = vadd.f32 %v1252, %v1270
        %v1272 = vpop.f32.mrf.mxu0
        %v1273 = vadd.f32 %v1254, %v1272
        %1274 = vdwg.mxu0
        %1275 = vmatpush.bf16.msra.mxu0 %v915
        %1276 = vmatpush.bf16.msra.mxu0 %v908
        %1277 = vmatpush.bf16.msra.mxu0 %v901
        %1278 = vmatpush.bf16.msra.mxu0 %v894
        %1279 = vmatpush.bf16.msra.mxu0 %v887
        %1280 = vmatpush.bf16.msra.mxu0 %v880
        %1281 = vmatpush.bf16.msra.mxu0 %v873
        %1282 = vmatpush.bf16.msra.mxu0 %v866
        %1283 = vmatmul.bf16.gmra.mxu0 %v361
        %v1284 = vpop.f32.mrf.mxu0
        %v1285 = vadd.f32 %v500, %v1284
        %v1286 = vpop.f32.mrf.mxu0
        %v1287 = vadd.f32 %v500, %v1286
        %1288 = vmatmul.bf16.gmra.mxu0 %v363
        %v1289 = vpop.f32.mrf.mxu0
        %v1290 = vadd.f32 %v500, %v1289
        %v1291 = vpop.f32.mrf.mxu0
        %v1292 = vadd.f32 %v500, %v1291
        %1293 = vdwg.mxu0
        %1294 = vmatpush.bf16.msra.mxu0 %v971
        %1295 = vmatpush.bf16.msra.mxu0 %v964
        %1296 = vmatpush.bf16.msra.mxu0 %v957
        %1297 = vmatpush.bf16.msra.mxu0 %v950
        %1298 = vmatpush.bf16.msra.mxu0 %v943
        %1299 = vmatpush.bf16.msra.mxu0 %v936
        %1300 = vmatpush.bf16.msra.mxu0 %v929
        %1301 = vmatpush.bf16.msra.mxu0 %v922
        %1302 = vmatmul.bf16.gmra.mxu0 %v362
        %v1303 = vpop.f32.mrf.mxu0
        %v1304 = vadd.f32 %v1285, %v1303
        %v1305 = vpop.f32.mrf.mxu0
        %v1306 = vadd.f32 %v1287, %v1305
        %1307 = vmatmul.bf16.gmra.mxu0 %v364
        %v1308 = vpop.f32.mrf.mxu0
        %v1309 = vadd.f32 %v1290, %v1308
        %v1310 = vpop.f32.mrf.mxu0
        %v1311 = vadd.f32 %v1292, %v1310
        %1312 = vdwg.mxu0
        %1313 = vmatpush.bf16.msra.mxu0 %v916
        %1314 = vmatpush.bf16.msra.mxu0 %v909
        %1315 = vmatpush.bf16.msra.mxu0 %v902
        %1316 = vmatpush.bf16.msra.mxu0 %v895
        %1317 = vmatpush.bf16.msra.mxu0 %v888
        %1318 = vmatpush.bf16.msra.mxu0 %v881
        %1319 = vmatpush.bf16.msra.mxu0 %v874
        %1320 = vmatpush.bf16.msra.mxu0 %v867
        %1321 = vmatmul.bf16.gmra.mxu0 %v361
        %v1322 = vpop.f32.mrf.mxu0
        %v1323 = vadd.f32 %v501, %v1322
        %v1324 = vpop.f32.mrf.mxu0
        %v1325 = vadd.f32 %v501, %v1324
        %1326 = vmatmul.bf16.gmra.mxu0 %v363
        %v1327 = vpop.f32.mrf.mxu0
        %v1328 = vadd.f32 %v501, %v1327
        %v1329 = vpop.f32.mrf.mxu0
        %v1330 = vadd.f32 %v501, %v1329
        %1331 = vdwg.mxu0
        %1332 = vmatpush.bf16.msra.mxu0 %v972
        %1333 = vmatpush.bf16.msra.mxu0 %v965
        %1334 = vmatpush.bf16.msra.mxu0 %v958
        %1335 = vmatpush.bf16.msra.mxu0 %v951
        %1336 = vmatpush.bf16.msra.mxu0 %v944
        %1337 = vmatpush.bf16.msra.mxu0 %v937
        %1338 = vmatpush.bf16.msra.mxu0 %v930
        %1339 = vmatpush.bf16.msra.mxu0 %v923
        %1340 = vmatmul.bf16.gmra.mxu0 %v362
        %v1341 = vpop.f32.mrf.mxu0
        %v1342 = vadd.f32 %v1323, %v1341
        %v1343 = vpop.f32.mrf.mxu0
        %v1344 = vadd.f32 %v1325, %v1343
        %1345 = vmatmul.bf16.gmra.mxu0 %v364
        %v1346 = vpop.f32.mrf.mxu0
        %v1347 = vadd.f32 %v1328, %v1346
        %v1348 = vpop.f32.mrf.mxu0
        %v1349 = vadd.f32 %v1330, %v1348
        %1350 = vdwg.mxu0
        %v1351 = vtanh.pop %v1114
        %v1352 = vtanh.pop %v1152
        %v1353 = vtanh.pop %v1190
        %v1354 = vtanh.pop %v1228
        %v1355 = vtanh.pop %v1266
        %v1356 = vtanh.pop %v1304
        %v1357 = vtanh.pop %v1342
        %v1358 = vtanh.pop %v1116
        %v1359 = vtanh.pop %v1154
        %v1360 = vtanh.pop %v1192
        %v1361 = vtanh.pop %v1230
        %v1362 = vtanh.pop %v1268
        %v1363 = vtanh.pop %v1306
        %v1364 = vtanh.pop %v1344
        %v1365 = vtanh.pop %v1119
        %v1366 = vtanh.pop %v1157
        %v1367 = vtanh.pop %v1195
        %v1368 = vtanh.pop %v1233
        %v1369 = vtanh.pop %v1271
        %v1370 = vtanh.pop %v1309
        %v1371 = vtanh.pop %v1347
        %v1372 = vtanh.pop %v1121
        %v1373 = vtanh.pop %v1159
        %v1374 = vtanh.pop %v1197
        %v1375 = vtanh.pop %v1235
        %v1376 = vtanh.pop %v1273
        %v1377 = vtanh.pop %v1311
        %v1378 = vtanh.pop %v1349
        %v1379 = vpack.c.bf16 %v1352, %v1351
        %v1380 = vpack.c.bf16 %v1354, %v1353
        %v1381 = vpack.c.bf16 %v1356, %v1355
        %v1382 = vpack.c.bf16 %v1357, %v1357
        %v1383 = vpack.c.bf16 %v1359, %v1358
        %v1384 = vpack.c.bf16 %v1361, %v1360
        %v1385 = vpack.c.bf16 %v1363, %v1362
        %v1386 = vpack.c.bf16 %v1364, %v1364
        %v1387 = vpack.c.bf16 %v1366, %v1365
        %v1388 = vpack.c.bf16 %v1368, %v1367
        %v1389 = vpack.c.bf16 %v1370, %v1369
        %v1390 = vpack.c.bf16 %v1371, %v1371
        %v1391 = vpack.c.bf16 %v1373, %v1372
        %v1392 = vpack.c.bf16 %v1375, %v1374
        %v1393 = vpack.c.bf16 %v1377, %v1376
        %v1394 = vpack.c.bf16 %v1378, %v1378
        %1395 = vst [vmem:[%s245] sm:$0xff] %v1379
        %1396 = vst [vmem:[%s245 + $0x8] sm:$0xff] %v1380
        %1397 = vst [vmem:[%s245 + $0x10] sm:$0xff] %v1381
        %1398 = vst [vmem:[%s245 + $0x18] sm:$0xf] %v1382
        %1399 = vst [vmem:[%s245 + $0x1c] sm:$0xff] %v1383
        %1400 = vst [vmem:[%s245 + $0x24] sm:$0xff] %v1384
        %1401 = vst [vmem:[%s245 + $0x2c] sm:$0xff] %v1385
        %1402 = vst [vmem:[%s245 + $0x34] sm:$0xf] %v1386
        %1403 = vst [vmem:[%s245 + $0x38] sm:$0xff] %v1387
        %1404 = vst [vmem:[%s245 + $0x40] sm:$0xff] %v1388
        %1405 = vst [vmem:[%s245 + $0x48] sm:$0xff] %v1389
        %1406 = vst [vmem:[%s245 + $0x50] sm:$0xf] %v1390
        %1407 = vst [vmem:[%s245 + $0x54] sm:$0xff] %v1391
        %1408 = vst [vmem:[%s245 + $0x5c] sm:$0xff] %v1392
        %1409 = vst [vmem:[%s245 + $0x64] sm:$0xff] %v1393
        %1410 = vst [vmem:[%s245 + $0x6c] sm:$0xf] %v1394
        %s1411 = smul.u32 4, %s17
        %p1412 = scmp.lt.s32.totalorder %s1411, 7
        %s1413 = scalar_select %p1412, %s1411, 7
        %s1414 = smul.addr %s1413, 7
        %s1415 = smul.addr %s1414, 4
        %s1416 = scalar_lea.vmem %s5, %s1415
        // Predicated region
        $region45: #{generator_forward.1} parent=39 // pred_check
          %p1417 = pneg %p145
        $region46: #{generator_forward.1} parent=39 // pred_check_branch
          %1419 = sbr.rel (%p1417) target = $region48
        $region47: #{generator_forward.1} parent=39 // pred_region
          %s1420 = smul.u32 4, %s17
        $region48: #{generator_forward.1} parent=39 // pred_fallthru
          _
      $region40: #{generator_forward.1} parent=5 // pred_fallthru
        _
      %p1421 = scmp.le.s32.totalorder 2, %s12
      // Predicated region
      $region49: #{generator_forward.1} parent=5 // pred_check
        %p1422 = pneg %p1421
      $region50: #{generator_forward.1} parent=5 // pred_check_branch
        %1424 = sbr.rel (%p1422) target = $region52
      $region51: #{generator_forward.1} parent=5 // pred_region
        %s1425 = ssub.s32 %s12, 2
        // Predicated region
        $region53: #{generator_forward.1} parent=51 // pred_check
          %p1426 = pneg %p151
        $region54: #{generator_forward.1} parent=51 // pred_check_branch
          %1428 = sbr.rel (%p1426) target = $region56
        $region55: #{generator_forward.1} parent=51 // pred_region
          %s1429 = smul.u32 4, %s18
          %p1430 = scmp.lt.s32.totalorder %s1429, 7
          %s1431 = scalar_select %p1430, %s1429, 7
          %s1432 = smul.addr %s1431, 7
          %s1433 = smul.addr %s1432, 4
          %s1434 = scalar_lea.vmem %s5, %s1433
        $region56: #{generator_forward.1} parent=51 // pred_fallthru
          _
      $region52: #{generator_forward.1} parent=5 // pred_fallthru
        _
    $region6: #{generator_forward.1} parent=1 // loop_footer
      %s16 = sadd.s32 1, %s12
    $region7: #{generator_forward.1} parent=1 // loop_footer_branch
      %11 = sbr.rel target = $region3
    $region8: #{generator_forward.1} parent=1 // loop_exit
      _
    %1435 = vsyncpa [#allocation3], 1
    %s1436 = scalar_lea.sflag [#allocation3], 1
    %1437 = vsyncpa %s1436, 1

</llo_original>
